<compile_context>
chip_gen: v7x
topology: tpu7x:2x2x1
jax: 0.10.0
libtpu: 0.0.40
codegen_flags: <defaults>
</compile_context>

<pallas_src>
import functools

import jax
import jax.numpy as jnp
import numpy as np
from jax.experimental import pallas as pl
from jax.experimental.pallas import tpu as pltpu


def _detection_kernel(x_ref, scale_ref, out_ref, *, num_anchors, num_attrs,
                      width, prior_shapes, xy_scale, input_is_normalized):
    """One (batch, spatial-tile) block of the YOLO detection layer.

    x_ref:     (A*K, T)      raw network output, channel-planar, flat spatial lane axis.
    scale_ref: (2,) SMEM f32 image_size / grid_size  (x-scale, y-scale).
    out_ref:   (A, K, T)     channel-planar output: xyxy box (f32 math), sigmoid probs.
    """
    A, K = num_anchors, num_attrs
    T = x_ref.shape[-1]
    f32 = jnp.float32
    out_dt = out_ref.dtype

    # Hoisted scalar reads.
    scale_x = scale_ref[0]
    scale_y = scale_ref[1]

    # Flat spatial index of this tile -> (row, col) grid-cell coordinates.
    # Exact in f32: H*W << 2**24 and correctly-rounded divide + floor is exact here.
    t0 = pl.program_id(1) * T
    idx = (jax.lax.broadcasted_iota(jnp.int32, (1, T), 1) + t0).astype(f32)
    w_f = jnp.float32(width)
    row = jnp.floor(idx / w_f)          # grid y
    col = idx - row * w_f               # grid x

    xy_off = 0.5 * (float(xy_scale) - 1.0)

    for a in range(A):
        base = a * K
        pw, ph = prior_shapes[a]

        xa = x_ref[base:base + K, :].astype(f32)                  # (K, T) slab

        if input_is_normalized:
            norm = xa
            half_w = (2.0 * pw) * jnp.square(xa[2:3, :])
            half_h = (2.0 * ph) * jnp.square(xa[3:4, :])
        else:
            # sigmoid(x) == 0.5*tanh(0.5*x) + 0.5 : one EUP op, full-slab vreg occupancy.
            norm = 0.5 * jnp.tanh(0.5 * xa) + 0.5                 # (K, T)
            wh = jnp.exp(xa[2:4, :])                              # (2, T)
            half_w = (0.5 * pw) * wh[0:1, :]
            half_h = (0.5 * ph) * wh[1:2, :]

        sx = norm[0:1, :]
        sy = norm[1:2, :]
        if xy_scale != 1.0:
            sx = sx * xy_scale - xy_off
            sy = sy * xy_scale - xy_off
        cx = (sx + col) * scale_x
        cy = (sy + row) * scale_y

        # Lane-dense row stores into the channel-planar output (no minor-axis concat).
        out_ref[a, 0:1] = (cx - half_w).astype(out_dt)
        out_ref[a, 1:2] = (cy - half_h).astype(out_dt)
        out_ref[a, 2:3] = (cx + half_w).astype(out_dt)
        out_ref[a, 3:4] = (cy + half_h).astype(out_dt)
        out_ref[a, 4:K] = norm[4:K, :].astype(out_dt)


def _pick_hw_tile(hw, num_planes, itemsize, batch, *,
                  target_block_bytes=2 << 20, max_tile=2048, min_total_steps=2):
    """Largest lane-dense (multiple-of-128) divisor of H*W meeting the size caps.

    Caps: block <= target_block_bytes (VMEM / double-buffer budget on all gens) and
    tile <= max_tile (bounds per-anchor vreg working set).  Falls back to the full
    spatial dim (always (8,128)-legal) when no 128-multiple divides H*W.
    Also prefers >= `min_total_steps` grid steps so v7x's 2 TCs both get work.
    """
    cands = [t for t in range(128, min(hw, max_tile) + 1, 128) if hw % t == 0]
    if not cands:
        return hw
    fitting = [t for t in cands if num_planes * t * itemsize <= target_block_bytes]
    pool = fitting if fitting else [min(cands)]
    t = max(pool)
    if batch * (hw // t) < min_total_steps:
        smaller = [c for c in pool if batch * (hw // c) >= min_total_steps]
        if smaller:
            t = max(smaller)
    return t


def detection_layer_forward(x_nchw, image_size, prior_shapes, num_classes,
                            xy_scale=1.0, input_is_normalized=False,
                            with_preds=True):
    """JAX/Pallas equivalent of DetectionLayer.forward.

    Returns (output, preds):
      output: [B, H*W*A, K] with xyxy boxes in image coords and sigmoid conf/classprobs.
      preds:  per-image dicts with 'boxes' (image coords) and raw (pre-sigmoid)
              'confidences' / 'classprobs' (as in the PyTorch module), or None when
              with_preds=False (inference fast path).
    """
    B, F, H, W = x_nchw.shape
    K = num_classes + 5
    A = F // K
    prior_list = tuple((float(w), float(h)) for (w, h) in np.asarray(prior_shapes))
    if A != len(prior_list):
        raise ValueError(
            f"The model predicts {A} boxes per location, but "
            f"{len(prior_list)} prior shapes are defined.")
    if A * K != F:
        raise ValueError("num_features must equal anchors_per_cell * (num_classes + 5).")

    HW = H * W
    in_itemsize = jnp.dtype(x_nchw.dtype).itemsize
    out_dtype = jnp.promote_types(x_nchw.dtype, jnp.float32)   # f32 boxes even for bf16 in
    out_itemsize = jnp.dtype(out_dtype).itemsize

    t_hw = _pick_hw_tile(HW, F, in_itemsize, B)
    grid = (B, HW // t_hw)

    x_flat = x_nchw.reshape(B, F, HW)                           # free: contiguous reshape
    scale = (image_size.astype(jnp.float32)
             / jnp.array([W, H], dtype=jnp.float32))            # (img_w/W, img_h/H)

    n_out = B * A * K * HW
    kernel = functools.partial(
        _detection_kernel, num_anchors=A, num_attrs=K, width=W,
        prior_shapes=prior_list, xy_scale=float(xy_scale),
        input_is_normalized=bool(input_is_normalized))

    out_planar = pl.pallas_call(
        kernel,
        out_shape=jax.ShapeDtypeStruct((B, A, K, HW), out_dtype),
        grid=grid,
        in_specs=[
            pl.BlockSpec((None, F, t_hw), lambda b, t: (b, 0, t)),
            pl.BlockSpec(memory_space=pltpu.MemorySpace.SMEM),
        ],
        out_specs=pl.BlockSpec((None, A, K, t_hw), lambda b, t: (b, 0, 0, t)),
        compiler_params=pltpu.CompilerParams(
            dimension_semantics=("parallel", "parallel")),
        cost_estimate=pl.CostEstimate(
            flops=int(12 * n_out),
            transcendentals=int(B * HW * (F + 2 * A)),
            bytes_accessed=int(B * F * HW * in_itemsize + n_out * out_itemsize)),
    )(x_flat, scale)

    # Mandatory [B, H*W*A, K] layout: one XLA permute of the planar kernel result.
    # TODO(synk): if the consumer (NMS / loss) can take the planar [B, A, K, H*W]
    # layout directly, drop this transpose and roughly halve the op's HBM traffic.
    out_hw_ak = jnp.transpose(out_planar, (0, 3, 1, 2))         # (B, HW, A, K)
    output = out_hw_ak.reshape(B, HW * A, K)

    if not with_preds:
        return output, None

    # preds (for loss computation): boxes in image coords, raw (pre-sigmoid) logits.
    out5 = out_hw_ak.reshape(B, H, W, A, K)
    boxes = out5[..., :4]                                           # (B, H, W, A, 4)
    x_planar = x_nchw.reshape(B, A, K, H, W)
    confidences = jnp.transpose(x_planar[:, :, 4], (0, 2, 3, 1))    # (B, H, W, A)
    classprobs = jnp.transpose(x_planar[:, :, 5:], (0, 3, 4, 1, 2))  # (B, H, W, A, C)
    preds = [{"boxes": b_, "confidences": c_, "classprobs": p_}
             for b_, c_, p_ in zip(boxes, confidences, classprobs)]
    # TODO(synk): match_targets / calculate_losses need torchvision-style matching and
    # YOLOLoss (data-dependent host-side control flow); only forward() is implemented.
    return output, preds


def _reference_forward(x_nchw, image_size, prior_shapes, num_classes, xy_scale=1.0):
    """Pure-JAX reference mirroring the PyTorch forward (input_is_normalized=False)."""
    B, F, H, W = x_nchw.shape
    K = num_classes + 5
    A = F // K
    x = jnp.transpose(x_nchw, (0, 2, 3, 1)).reshape(B, H, W, A, K).astype(jnp.float32)
    sig = jax.nn.sigmoid(x)
    xy = sig[..., :2] * xy_scale - 0.5 * (xy_scale - 1.0)
    wh = x[..., 2:4]
    grid_size = jnp.array([W, H], dtype=jnp.float32)
    gy, gx = jnp.meshgrid(jnp.arange(H), jnp.arange(W), indexing="ij")
    offset = jnp.stack([gx, gy], -1)[:, :, None, :].astype(jnp.float32)   # (H, W, 1, 2)
    image_xy = (xy + offset) * (image_size.astype(jnp.float32) / grid_size)
    image_wh = jnp.exp(wh) * jnp.asarray(prior_shapes, jnp.float32)
    cx, cy = image_xy[..., 0], image_xy[..., 1]
    ww, hh = image_wh[..., 0], image_wh[..., 1]
    box = jnp.stack([cx - 0.5 * ww, cy - 0.5 * hh,
                     cx + 0.5 * ww, cy + 0.5 * hh], -1)
    out = jnp.concatenate([box, sig[..., 4:5], sig[..., 5:]], -1)
    return out.reshape(B, H * W * A, K)


if __name__ == "__main__":
    key = jax.random.PRNGKey(0)
    num_classes = 3                                   # K = num_attrs = 8
    prior_shapes = jnp.array([[16.0, 16.0],
                              [32.0, 32.0],
                              [64.0, 48.0]], dtype=jnp.float32)  # A = 3
    A = prior_shapes.shape[0]
    K = num_classes + 5
    F = A * K                                         # 24
    image_size = jnp.array([256.0, 256.0], dtype=jnp.float32)    # (width, height)
    k1, k2 = jax.random.split(key)

    # Case 1: 16x16 head (H*W = 256 -> lane-dense 128-multiple tiling), xy_scale = 1.0.
    B, H, W = 2, 16, 16
    x = jax.random.normal(k1, (B, F, H, W), dtype=jnp.float32)
    output, preds = detection_layer_forward(x, image_size, prior_shapes,
                                            num_classes, xy_scale=1.0)
    output = jax.block_until_ready(output)
    ref = jax.block_until_ready(
        _reference_forward(x, image_size, prior_shapes, num_classes, xy_scale=1.0))
    np.testing.assert_allclose(np.asarray(output), np.asarray(ref),
                               rtol=1e-5, atol=5e-5)
    assert output.shape == (B, H * W * A, K)
    assert len(preds) == B
    assert preds[0]["boxes"].shape == (H, W, A, 4)
    assert preds[0]["confidences"].shape == (H, W, A)
    assert preds[0]["classprobs"].shape == (H, W, A, num_classes)

    # Case 2: 13x13 head (H*W = 169 -> full-dim lane block) with xy_scale = 1.05.
    B2, H2, W2 = 2, 13, 13
    x2 = jax.random.normal(k2, (B2, F, H2, W2), dtype=jnp.float32)
    out2, _ = detection_layer_forward(x2, image_size, prior_shapes, num_classes,
                                      xy_scale=1.05, with_preds=False)
    out2 = jax.block_until_ready(out2)
    ref2 = jax.block_until_ready(
        _reference_forward(x2, image_size, prior_shapes, num_classes, xy_scale=1.05))
    np.testing.assert_allclose(np.asarray(out2), np.asarray(ref2),
                               rtol=1e-5, atol=5e-5)

    print("KERNEL_OK")
</pallas_src>

<mosaic_0001>
module attributes {stable_mosaic.version = 11 : i64} {
  func.func @_detection_kernel(%arg0: i32, %arg1: i32, %arg2: memref<1x24x256xf32, #tpu.memory_space<vmem>>, %arg3: memref<2xf32, #tpu.memory_space<smem>>, %arg4: memref<1x3x8x256xf32, #tpu.memory_space<vmem>>) attributes {dimension_semantics = [#tpu.dimension_semantics<parallel>, #tpu.dimension_semantics<parallel>], iteration_bounds = array<i64: 2, 1>, scalar_prefetch = 0 : i64, scratch_operands = 0 : i64, tpu.core_type = #tpu.core_type<tc>, window_params = [{transform_indices = @transform_0, window_bounds = array<i64: 1, 24, 256>}, {transform_indices = @transform_1, window_bounds = array<i64: 2>}, {transform_indices = @transform_2, window_bounds = array<i64: 1, 3, 8, 256>}]} {
    %c0 = arith.constant 0 : index
    %0 = memref.load %arg3[%c0] : memref<2xf32, #tpu.memory_space<smem>>
    %c1 = arith.constant 1 : index
    %1 = memref.load %arg3[%c1] : memref<2xf32, #tpu.memory_space<smem>>
    %c256_i32 = arith.constant 256 : i32
    %2 = arith.muli %arg1, %c256_i32 : i32
    %3 = tpu.iota {dimensions = array<i32: 1>} : vector<1x256xi32>
    %4 = vector.broadcast %2 : i32 to vector<1x256xi32>
    %5 = arith.addi %3, %4 : vector<1x256xi32>
    %6 = arith.sitofp %5 : vector<1x256xi32> to vector<1x256xf32>
    %cst = arith.constant 1.600000e+01 : f32
    %7 = vector.broadcast %cst : f32 to vector<1x256xf32>
    %8 = arith.divf %6, %7 : vector<1x256xf32>
    %9 = math.floor %8 : vector<1x256xf32>
    %cst_0 = arith.constant 1.600000e+01 : f32
    %10 = vector.broadcast %cst_0 : f32 to vector<1x256xf32>
    %11 = arith.mulf %9, %10 : vector<1x256xf32>
    %12 = arith.subf %6, %11 : vector<1x256xf32>
    %c0_1 = arith.constant 0 : index
    %c0_2 = arith.constant 0 : index
    %c0_3 = arith.constant 0 : index
    %13 = vector.load %arg2[%c0_1, %c0_2, %c0_3] : memref<1x24x256xf32, #tpu.memory_space<vmem>>, vector<1x8x256xf32>
    %14 = vector.shape_cast %13 : vector<1x8x256xf32> to vector<8x256xf32>
    %cst_4 = arith.constant 5.000000e-01 : f32
    %15 = vector.broadcast %cst_4 : f32 to vector<8x256xf32>
    %16 = arith.mulf %15, %14 : vector<8x256xf32>
    %17 = math.tanh %16 : vector<8x256xf32>
    %cst_5 = arith.constant 5.000000e-01 : f32
    %18 = vector.broadcast %cst_5 : f32 to vector<8x256xf32>
    %19 = arith.mulf %18, %17 : vector<8x256xf32>
    %cst_6 = arith.constant 5.000000e-01 : f32
    %20 = vector.broadcast %cst_6 : f32 to vector<8x256xf32>
    %21 = arith.addf %19, %20 : vector<8x256xf32>
    %22 = vector.extract_strided_slice %14 {offsets = [2, 0], sizes = [2, 256], strides = [1, 1]} : vector<8x256xf32> to vector<2x256xf32>
    %23 = math.exp %22 : vector<2x256xf32>
    %24 = vector.extract_strided_slice %23 {offsets = [0, 0], sizes = [1, 256], strides = [1, 1]} : vector<2x256xf32> to vector<1x256xf32>
    %cst_7 = arith.constant 8.000000e+00 : f32
    %25 = vector.broadcast %cst_7 : f32 to vector<1x256xf32>
    %26 = arith.mulf %25, %24 : vector<1x256xf32>
    %27 = vector.extract_strided_slice %23 {offsets = [1, 0], sizes = [1, 256], strides = [1, 1]} : vector<2x256xf32> to vector<1x256xf32>
    %cst_8 = arith.constant 8.000000e+00 : f32
    %28 = vector.broadcast %cst_8 : f32 to vector<1x256xf32>
    %29 = arith.mulf %28, %27 : vector<1x256xf32>
    %30 = vector.extract_strided_slice %21 {offsets = [0, 0], sizes = [1, 256], strides = [1, 1]} : vector<8x256xf32> to vector<1x256xf32>
    %31 = vector.extract_strided_slice %21 {offsets = [1, 0], sizes = [1, 256], strides = [1, 1]} : vector<8x256xf32> to vector<1x256xf32>
    %32 = arith.addf %30, %12 : vector<1x256xf32>
    %33 = vector.broadcast %0 : f32 to vector<1x256xf32>
    %34 = arith.mulf %32, %33 : vector<1x256xf32>
    %35 = arith.addf %31, %9 : vector<1x256xf32>
    %36 = vector.broadcast %1 : f32 to vector<1x256xf32>
    %37 = arith.mulf %35, %36 : vector<1x256xf32>
    %38 = arith.subf %34, %26 : vector<1x256xf32>
    %c0_9 = arith.constant 0 : index
    %c0_10 = arith.constant 0 : index
    %c0_11 = arith.constant 0 : index
    %c0_12 = arith.constant 0 : index
    %39 = vector.load %arg4[%c0_9, %c0_10, %c0_11, %c0_12] : memref<1x3x8x256xf32, #tpu.memory_space<vmem>>, vector<1x1x1x256xf32>
    %40 = vector.shape_cast %39 : vector<1x1x1x256xf32> to vector<1x256xf32>
    %41 = vector.shape_cast %38 : vector<1x256xf32> to vector<1x1x1x256xf32>
    tpu.vector_store %arg4[%c0_9, %c0_10, %c0_11, %c0_12], %41 {strides = array<i32>} : memref<1x3x8x256xf32, #tpu.memory_space<vmem>>, vector<1x1x1x256xf32>,
    %42 = arith.subf %37, %29 : vector<1x256xf32>
    %c0_13 = arith.constant 0 : index
    %c0_14 = arith.constant 0 : index
    %c1_15 = arith.constant 1 : index
    %c0_16 = arith.constant 0 : index
    %43 = vector.load %arg4[%c0_13, %c0_14, %c1_15, %c0_16] : memref<1x3x8x256xf32, #tpu.memory_space<vmem>>, vector<1x1x1x256xf32>
    %44 = vector.shape_cast %43 : vector<1x1x1x256xf32> to vector<1x256xf32>
    %45 = vector.shape_cast %42 : vector<1x256xf32> to vector<1x1x1x256xf32>
    tpu.vector_store %arg4[%c0_13, %c0_14, %c1_15, %c0_16], %45 {strides = array<i32>} : memref<1x3x8x256xf32, #tpu.memory_space<vmem>>, vector<1x1x1x256xf32>,
    %46 = arith.addf %34, %26 : vector<1x256xf32>
    %c0_17 = arith.constant 0 : index
    %c0_18 = arith.constant 0 : index
    %c2 = arith.constant 2 : index
    %c0_19 = arith.constant 0 : index
    %47 = vector.load %arg4[%c0_17, %c0_18, %c2, %c0_19] : memref<1x3x8x256xf32, #tpu.memory_space<vmem>>, vector<1x1x1x256xf32>
    %48 = vector.shape_cast %47 : vector<1x1x1x256xf32> to vector<1x256xf32>
    %49 = vector.shape_cast %46 : vector<1x256xf32> to vector<1x1x1x256xf32>
    tpu.vector_store %arg4[%c0_17, %c0_18, %c2, %c0_19], %49 {strides = array<i32>} : memref<1x3x8x256xf32, #tpu.memory_space<vmem>>, vector<1x1x1x256xf32>,
    %50 = arith.addf %37, %29 : vector<1x256xf32>
    %c0_20 = arith.constant 0 : index
    %c0_21 = arith.constant 0 : index
    %c3 = arith.constant 3 : index
    %c0_22 = arith.constant 0 : index
    %51 = vector.load %arg4[%c0_20, %c0_21, %c3, %c0_22] : memref<1x3x8x256xf32, #tpu.memory_space<vmem>>, vector<1x1x1x256xf32>
    %52 = vector.shape_cast %51 : vector<1x1x1x256xf32> to vector<1x256xf32>
    %53 = vector.shape_cast %50 : vector<1x256xf32> to vector<1x1x1x256xf32>
    tpu.vector_store %arg4[%c0_20, %c0_21, %c3, %c0_22], %53 {strides = array<i32>} : memref<1x3x8x256xf32, #tpu.memory_space<vmem>>, vector<1x1x1x256xf32>,
    %54 = vector.extract_strided_slice %21 {offsets = [4, 0], sizes = [4, 256], strides = [1, 1]} : vector<8x256xf32> to vector<4x256xf32>
    %c0_23 = arith.constant 0 : index
    %c0_24 = arith.constant 0 : index
    %c4 = arith.constant 4 : index
    %c0_25 = arith.constant 0 : index
    %55 = vector.load %arg4[%c0_23, %c0_24, %c4, %c0_25] : memref<1x3x8x256xf32, #tpu.memory_space<vmem>>, vector<1x1x4x256xf32>
    %56 = vector.shape_cast %55 : vector<1x1x4x256xf32> to vector<4x256xf32>
    %57 = vector.shape_cast %54 : vector<4x256xf32> to vector<1x1x4x256xf32>
    tpu.vector_store %arg4[%c0_23, %c0_24, %c4, %c0_25], %57 {strides = array<i32>} : memref<1x3x8x256xf32, #tpu.memory_space<vmem>>, vector<1x1x4x256xf32>,
    %c0_26 = arith.constant 0 : index
    %c8 = arith.constant 8 : index
    %c0_27 = arith.constant 0 : index
    %58 = vector.load %arg2[%c0_26, %c8, %c0_27] : memref<1x24x256xf32, #tpu.memory_space<vmem>>, vector<1x8x256xf32>
    %59 = vector.shape_cast %58 : vector<1x8x256xf32> to vector<8x256xf32>
    %cst_28 = arith.constant 5.000000e-01 : f32
    %60 = vector.broadcast %cst_28 : f32 to vector<8x256xf32>
    %61 = arith.mulf %60, %59 : vector<8x256xf32>
    %62 = math.tanh %61 : vector<8x256xf32>
    %cst_29 = arith.constant 5.000000e-01 : f32
    %63 = vector.broadcast %cst_29 : f32 to vector<8x256xf32>
    %64 = arith.mulf %63, %62 : vector<8x256xf32>
    %cst_30 = arith.constant 5.000000e-01 : f32
    %65 = vector.broadcast %cst_30 : f32 to vector<8x256xf32>
    %66 = arith.addf %64, %65 : vector<8x256xf32>
    %67 = vector.extract_strided_slice %59 {offsets = [2, 0], sizes = [2, 256], strides = [1, 1]} : vector<8x256xf32> to vector<2x256xf32>
    %68 = math.exp %67 : vector<2x256xf32>
    %69 = vector.extract_strided_slice %68 {offsets = [0, 0], sizes = [1, 256], strides = [1, 1]} : vector<2x256xf32> to vector<1x256xf32>
    %cst_31 = arith.constant 1.600000e+01 : f32
    %70 = vector.broadcast %cst_31 : f32 to vector<1x256xf32>
    %71 = arith.mulf %70, %69 : vector<1x256xf32>
    %72 = vector.extract_strided_slice %68 {offsets = [1, 0], sizes = [1, 256], strides = [1, 1]} : vector<2x256xf32> to vector<1x256xf32>
    %cst_32 = arith.constant 1.600000e+01 : f32
    %73 = vector.broadcast %cst_32 : f32 to vector<1x256xf32>
    %74 = arith.mulf %73, %72 : vector<1x256xf32>
    %75 = vector.extract_strided_slice %66 {offsets = [0, 0], sizes = [1, 256], strides = [1, 1]} : vector<8x256xf32> to vector<1x256xf32>
    %76 = vector.extract_strided_slice %66 {offsets = [1, 0], sizes = [1, 256], strides = [1, 1]} : vector<8x256xf32> to vector<1x256xf32>
    %77 = arith.addf %75, %12 : vector<1x256xf32>
    %78 = vector.broadcast %0 : f32 to vector<1x256xf32>
    %79 = arith.mulf %77, %78 : vector<1x256xf32>
    %80 = arith.addf %76, %9 : vector<1x256xf32>
    %81 = vector.broadcast %1 : f32 to vector<1x256xf32>
    %82 = arith.mulf %80, %81 : vector<1x256xf32>
    %83 = arith.subf %79, %71 : vector<1x256xf32>
    %c0_33 = arith.constant 0 : index
    %c1_34 = arith.constant 1 : index
    %c0_35 = arith.constant 0 : index
    %c0_36 = arith.constant 0 : index
    %84 = vector.load %arg4[%c0_33, %c1_34, %c0_35, %c0_36] : memref<1x3x8x256xf32, #tpu.memory_space<vmem>>, vector<1x1x1x256xf32>
    %85 = vector.shape_cast %84 : vector<1x1x1x256xf32> to vector<1x256xf32>
    %86 = vector.shape_cast %83 : vector<1x256xf32> to vector<1x1x1x256xf32>
    tpu.vector_store %arg4[%c0_33, %c1_34, %c0_35, %c0_36], %86 {strides = array<i32>} : memref<1x3x8x256xf32, #tpu.memory_space<vmem>>, vector<1x1x1x256xf32>,
    %87 = arith.subf %82, %74 : vector<1x256xf32>
    %c0_37 = arith.constant 0 : index
    %c1_38 = arith.constant 1 : index
    %c1_39 = arith.constant 1 : index
    %c0_40 = arith.constant 0 : index
    %88 = vector.load %arg4[%c0_37, %c1_38, %c1_39, %c0_40] : memref<1x3x8x256xf32, #tpu.memory_space<vmem>>, vector<1x1x1x256xf32>
    %89 = vector.shape_cast %88 : vector<1x1x1x256xf32> to vector<1x256xf32>
    %90 = vector.shape_cast %87 : vector<1x256xf32> to vector<1x1x1x256xf32>
    tpu.vector_store %arg4[%c0_37, %c1_38, %c1_39, %c0_40], %90 {strides = array<i32>} : memref<1x3x8x256xf32, #tpu.memory_space<vmem>>, vector<1x1x1x256xf32>,
    %91 = arith.addf %79, %71 : vector<1x256xf32>
    %c0_41 = arith.constant 0 : index
    %c1_42 = arith.constant 1 : index
    %c2_43 = arith.constant 2 : index
    %c0_44 = arith.constant 0 : index
    %92 = vector.load %arg4[%c0_41, %c1_42, %c2_43, %c0_44] : memref<1x3x8x256xf32, #tpu.memory_space<vmem>>, vector<1x1x1x256xf32>
    %93 = vector.shape_cast %92 : vector<1x1x1x256xf32> to vector<1x256xf32>
    %94 = vector.shape_cast %91 : vector<1x256xf32> to vector<1x1x1x256xf32>
    tpu.vector_store %arg4[%c0_41, %c1_42, %c2_43, %c0_44], %94 {strides = array<i32>} : memref<1x3x8x256xf32, #tpu.memory_space<vmem>>, vector<1x1x1x256xf32>,
    %95 = arith.addf %82, %74 : vector<1x256xf32>
    %c0_45 = arith.constant 0 : index
    %c1_46 = arith.constant 1 : index
    %c3_47 = arith.constant 3 : index
    %c0_48 = arith.constant 0 : index
    %96 = vector.load %arg4[%c0_45, %c1_46, %c3_47, %c0_48] : memref<1x3x8x256xf32, #tpu.memory_space<vmem>>, vector<1x1x1x256xf32>
    %97 = vector.shape_cast %96 : vector<1x1x1x256xf32> to vector<1x256xf32>
    %98 = vector.shape_cast %95 : vector<1x256xf32> to vector<1x1x1x256xf32>
    tpu.vector_store %arg4[%c0_45, %c1_46, %c3_47, %c0_48], %98 {strides = array<i32>} : memref<1x3x8x256xf32, #tpu.memory_space<vmem>>, vector<1x1x1x256xf32>,
    %99 = vector.extract_strided_slice %66 {offsets = [4, 0], sizes = [4, 256], strides = [1, 1]} : vector<8x256xf32> to vector<4x256xf32>
    %c0_49 = arith.constant 0 : index
    %c1_50 = arith.constant 1 : index
    %c4_51 = arith.constant 4 : index
    %c0_52 = arith.constant 0 : index
    %100 = vector.load %arg4[%c0_49, %c1_50, %c4_51, %c0_52] : memref<1x3x8x256xf32, #tpu.memory_space<vmem>>, vector<1x1x4x256xf32>
    %101 = vector.shape_cast %100 : vector<1x1x4x256xf32> to vector<4x256xf32>
    %102 = vector.shape_cast %99 : vector<4x256xf32> to vector<1x1x4x256xf32>
    tpu.vector_store %arg4[%c0_49, %c1_50, %c4_51, %c0_52], %102 {strides = array<i32>} : memref<1x3x8x256xf32, #tpu.memory_space<vmem>>, vector<1x1x4x256xf32>,
    %c0_53 = arith.constant 0 : index
    %c16 = arith.constant 16 : index
    %c0_54 = arith.constant 0 : index
    %103 = vector.load %arg2[%c0_53, %c16, %c0_54] : memref<1x24x256xf32, #tpu.memory_space<vmem>>, vector<1x8x256xf32>
    %104 = vector.shape_cast %103 : vector<1x8x256xf32> to vector<8x256xf32>
    %cst_55 = arith.constant 5.000000e-01 : f32
    %105 = vector.broadcast %cst_55 : f32 to vector<8x256xf32>
    %106 = arith.mulf %105, %104 : vector<8x256xf32>
    %107 = math.tanh %106 : vector<8x256xf32>
    %cst_56 = arith.constant 5.000000e-01 : f32
    %108 = vector.broadcast %cst_56 : f32 to vector<8x256xf32>
    %109 = arith.mulf %108, %107 : vector<8x256xf32>
    %cst_57 = arith.constant 5.000000e-01 : f32
    %110 = vector.broadcast %cst_57 : f32 to vector<8x256xf32>
    %111 = arith.addf %109, %110 : vector<8x256xf32>
    %112 = vector.extract_strided_slice %104 {offsets = [2, 0], sizes = [2, 256], strides = [1, 1]} : vector<8x256xf32> to vector<2x256xf32>
    %113 = math.exp %112 : vector<2x256xf32>
    %114 = vector.extract_strided_slice %113 {offsets = [0, 0], sizes = [1, 256], strides = [1, 1]} : vector<2x256xf32> to vector<1x256xf32>
    %cst_58 = arith.constant 3.200000e+01 : f32
    %115 = vector.broadcast %cst_58 : f32 to vector<1x256xf32>
    %116 = arith.mulf %115, %114 : vector<1x256xf32>
    %117 = vector.extract_strided_slice %113 {offsets = [1, 0], sizes = [1, 256], strides = [1, 1]} : vector<2x256xf32> to vector<1x256xf32>
    %cst_59 = arith.constant 2.400000e+01 : f32
    %118 = vector.broadcast %cst_59 : f32 to vector<1x256xf32>
    %119 = arith.mulf %118, %117 : vector<1x256xf32>
    %120 = vector.extract_strided_slice %111 {offsets = [0, 0], sizes = [1, 256], strides = [1, 1]} : vector<8x256xf32> to vector<1x256xf32>
    %121 = vector.extract_strided_slice %111 {offsets = [1, 0], sizes = [1, 256], strides = [1, 1]} : vector<8x256xf32> to vector<1x256xf32>
    %122 = arith.addf %120, %12 : vector<1x256xf32>
    %123 = vector.broadcast %0 : f32 to vector<1x256xf32>
    %124 = arith.mulf %122, %123 : vector<1x256xf32>
    %125 = arith.addf %121, %9 : vector<1x256xf32>
    %126 = vector.broadcast %1 : f32 to vector<1x256xf32>
    %127 = arith.mulf %125, %126 : vector<1x256xf32>
    %128 = arith.subf %124, %116 : vector<1x256xf32>
    %c0_60 = arith.constant 0 : index
    %c2_61 = arith.constant 2 : index
    %c0_62 = arith.constant 0 : index
    %c0_63 = arith.constant 0 : index
    %129 = vector.load %arg4[%c0_60, %c2_61, %c0_62, %c0_63] : memref<1x3x8x256xf32, #tpu.memory_space<vmem>>, vector<1x1x1x256xf32>
    %130 = vector.shape_cast %129 : vector<1x1x1x256xf32> to vector<1x256xf32>
    %131 = vector.shape_cast %128 : vector<1x256xf32> to vector<1x1x1x256xf32>
    tpu.vector_store %arg4[%c0_60, %c2_61, %c0_62, %c0_63], %131 {strides = array<i32>} : memref<1x3x8x256xf32, #tpu.memory_space<vmem>>, vector<1x1x1x256xf32>,
    %132 = arith.subf %127, %119 : vector<1x256xf32>
    %c0_64 = arith.constant 0 : index
    %c2_65 = arith.constant 2 : index
    %c1_66 = arith.constant 1 : index
    %c0_67 = arith.constant 0 : index
    %133 = vector.load %arg4[%c0_64, %c2_65, %c1_66, %c0_67] : memref<1x3x8x256xf32, #tpu.memory_space<vmem>>, vector<1x1x1x256xf32>
    %134 = vector.shape_cast %133 : vector<1x1x1x256xf32> to vector<1x256xf32>
    %135 = vector.shape_cast %132 : vector<1x256xf32> to vector<1x1x1x256xf32>
    tpu.vector_store %arg4[%c0_64, %c2_65, %c1_66, %c0_67], %135 {strides = array<i32>} : memref<1x3x8x256xf32, #tpu.memory_space<vmem>>, vector<1x1x1x256xf32>,
    %136 = arith.addf %124, %116 : vector<1x256xf32>
    %c0_68 = arith.constant 0 : index
    %c2_69 = arith.constant 2 : index
    %c2_70 = arith.constant 2 : index
    %c0_71 = arith.constant 0 : index
    %137 = vector.load %arg4[%c0_68, %c2_69, %c2_70, %c0_71] : memref<1x3x8x256xf32, #tpu.memory_space<vmem>>, vector<1x1x1x256xf32>
    %138 = vector.shape_cast %137 : vector<1x1x1x256xf32> to vector<1x256xf32>
    %139 = vector.shape_cast %136 : vector<1x256xf32> to vector<1x1x1x256xf32>
    tpu.vector_store %arg4[%c0_68, %c2_69, %c2_70, %c0_71], %139 {strides = array<i32>} : memref<1x3x8x256xf32, #tpu.memory_space<vmem>>, vector<1x1x1x256xf32>,
    %140 = arith.addf %127, %119 : vector<1x256xf32>
    %c0_72 = arith.constant 0 : index
    %c2_73 = arith.constant 2 : index
    %c3_74 = arith.constant 3 : index
    %c0_75 = arith.constant 0 : index
    %141 = vector.load %arg4[%c0_72, %c2_73, %c3_74, %c0_75] : memref<1x3x8x256xf32, #tpu.memory_space<vmem>>, vector<1x1x1x256xf32>
    %142 = vector.shape_cast %141 : vector<1x1x1x256xf32> to vector<1x256xf32>
    %143 = vector.shape_cast %140 : vector<1x256xf32> to vector<1x1x1x256xf32>
    tpu.vector_store %arg4[%c0_72, %c2_73, %c3_74, %c0_75], %143 {strides = array<i32>} : memref<1x3x8x256xf32, #tpu.memory_space<vmem>>, vector<1x1x1x256xf32>,
    %144 = vector.extract_strided_slice %111 {offsets = [4, 0], sizes = [4, 256], strides = [1, 1]} : vector<8x256xf32> to vector<4x256xf32>
    %c0_76 = arith.constant 0 : index
    %c2_77 = arith.constant 2 : index
    %c4_78 = arith.constant 4 : index
    %c0_79 = arith.constant 0 : index
    %145 = vector.load %arg4[%c0_76, %c2_77, %c4_78, %c0_79] : memref<1x3x8x256xf32, #tpu.memory_space<vmem>>, vector<1x1x4x256xf32>
    %146 = vector.shape_cast %145 : vector<1x1x4x256xf32> to vector<4x256xf32>
    %147 = vector.shape_cast %144 : vector<4x256xf32> to vector<1x1x4x256xf32>
    tpu.vector_store %arg4[%c0_76, %c2_77, %c4_78, %c0_79], %147 {strides = array<i32>} : memref<1x3x8x256xf32, #tpu.memory_space<vmem>>, vector<1x1x4x256xf32>,
    return
  }
  func.func @transform_0(%arg0: i32, %arg1: i32) -> (i32, i32, i32) {
    %c0_i32 = arith.constant 0 : i32
    %c0_i32_0 = arith.constant 0 : i32
    return %arg0, %c0_i32, %arg1 : i32, i32, i32
  }
  func.func @transform_1(%arg0: i32, %arg1: i32) -> i32 {
    %c0_i32 = arith.constant 0 : i32
    %c0_i32_0 = arith.constant 0 : i32
    return %c0_i32 : i32
  }
  func.func @transform_2(%arg0: i32, %arg1: i32) -> (i32, i32, i32, i32) {
    %c0_i32 = arith.constant 0 : i32
    %c0_i32_0 = arith.constant 0 : i32
    %c0_i32_1 = arith.constant 0 : i32
    return %arg0, %c0_i32, %c0_i32_0, %arg1 : i32, i32, i32, i32
  }
}

</mosaic_0001>

<llo_original>
// kernel: tpu_custom_call.1
$region0: #{tpu_custom_call.1}
  #allocation0 [shape = 'u32[]', space=smem, size = 0x4, offset = 0x4, fixed_abs, tag = 'smem constant byte address 0x4 - core index']
  #allocation1 [shape = 'u32[144,128]{1,0:T(1,128)}', space=vmem, size = 0x12000, scoped, tag = 'internal scratch']
  %s0 = inlined_call_operand.hbm [shape: f32[2,24,256], index: 0, kind: input, shape index: {}]
  %s1 = inlined_call_operand.vmem [shape: f32[2], index: 1, kind: input, shape index: {}]
  %s2 = inlined_call_operand.hbm [shape: f32[2,3,8,256], index: 2, kind: output, shape index: {}]
  %s3 = sld [smem:[#allocation0]]
  $region49: #{tpu_custom_call.1} parent=0
    _
  %s5 = ssub.s32 1, %s3
  %s6 = scalar_select 0, %s5, %s3
  $region1: #{tpu_custom_call.1} parent=0
    #allocation2 [shape = 'u8[49152]{0}', space=vmem, size = 0xc000, scoped, tag = 'input window, operand 0']
    #allocation3 [shape = 's32[2]{0}', space=sflag, size = 0x8, scoped, tag = 'scoped memory for tpu_custom_call.1']
    #allocation4 [shape = 's32[2]{0}', space=sflag, size = 0x8, scoped, tag = 'scoped memory for tpu_custom_call.1']
    #allocation5 [shape = 's32[2]{0}', space=sflag, size = 0x8, scoped, tag = 'scoped memory for tpu_custom_call.1']
    #allocation6 [shape = 'u8[512]{0}', space=smem, size = 0x200, scoped, tag = 'input window, operand 1, single buffered']
    #allocation7 [shape = 'u8[49152]{0}', space=vmem, size = 0xc000, scoped, tag = 'output window, operand 0']
    %7 = vsyncpa [#allocation3], 0
    %s8 = scalar_lea.sflag [#allocation3], 1
    %9 = vsyncpa %s8, 0
    %10 = vsyncpa [#allocation5], 0
    %11 = vsyncpa [#allocation4], 0
    %s12 = scalar_lea.sflag [#allocation4], 1
    %13 = vsyncpa %s12, 0
    loop: start=0, step=1, limit=4
    $region2: #{tpu_custom_call.1} parent=1 // loop_pre_header
      _
    $region3: #{tpu_custom_call.1} parent=1 // loop_header
      %s15 = sphi 0, %s19
      %p16 = scmp.ge.s32.totalorder %s15, 4
      %s22 = sphi 0, %s34
      %s23 = sphi 0, %s30
      %s24 = sphi 0, %s22
      %s25 = sphi 0, %s23
      %s26 = sphi 0, %s24
      %s27 = sphi 0, %s25
      %s39 = sphi 0, %s41
      %s42 = sphi 0, %s39
      %s43 = sphi 0, %s42
      %s59 = sphi 0, %s43
      %s63 = sphi 0, %s63
      %s65 = sphi 0, %s63
      %s66 = sphi 0, %s65
      %s80 = sphi 0, %s66
      %s88 = sphi 0, %s90
      %s91 = sphi 0, %s88
      %s92 = sphi 0, %s91
      %s108 = sphi 0, %s92
    $region4: #{tpu_custom_call.1} parent=1 // loop_header_branch
      %18 = sbr.rel (%p16) target = $region8
    $region5: #{tpu_custom_call.1} parent=1 // loop_body
      %s20 = ssub.s32 %s15, 1
      %s21 = ssub.s32 %s15, 2
      %s28 = sadd.s32 1, %s23
      %p29 = scmp.ge.s32.totalorder %s28, 1
      %s30 = scalar_select %p29, 0, %s28
      %s31 = sadd.s32 1, %s22
      %s32 = scalar_select %p29, %s31, %s22
      %p33 = scmp.ge.s32.totalorder %s32, 2
      %s34 = scalar_select %p33, 0, %s32
      %s35 = ssub.s32 %s22, %s34
      %s36 = ssub.s32 %s23, %s30
      %s37 = sor.u32 %s35, %s36
      %p38 = scmp.eq.s32.totalorder %s37, 0
      %s40 = sadd.s32 %s39, 1
      %s41 = scalar_select %p38, %s39, %s40
      %p44 = pneg %p38
      %p45 = scmp.eq.s32.totalorder %s15, 1
      %p46 = por %p44, %p45
      %p47 = scmp.ne.s32.totalorder %s39, %s42
      %p48 = scmp.eq.s32.totalorder %s15, 0
      %p49 = por %p47, %p48
      %p50 = scmp.ne.s32.totalorder %s39, %s42
      %p51 = scmp.eq.s32.totalorder %s20, 1
      %p52 = por %p50, %p51
      %p53 = scmp.ne.s32.totalorder %s42, %s43
      %p54 = scmp.eq.s32.totalorder %s20, 0
      %p55 = por %p53, %p54
      %p56 = scmp.ne.s32.totalorder %s42, %s43
      %p57 = scmp.eq.s32.totalorder %s21, 1
      %p58 = por %p56, %p57
      %p60 = scmp.ne.s32.totalorder %s43, %s59
      %p61 = scmp.eq.s32.totalorder %s21, 0
      %p62 = por %p60, %p61
      %s64 = sadd.s32 %s63, 1
      %p67 = scmp.eq.s32.totalorder %s15, 1
      %p68 = scmp.ne.s32.totalorder %s63, %s65
      %p69 = scmp.eq.s32.totalorder %s15, 0
      %p70 = por %p68, %p69
      %p71 = scmp.ne.s32.totalorder %s63, %s65
      %p72 = scmp.eq.s32.totalorder %s20, 1
      %p73 = por %p71, %p72
      %p74 = scmp.ne.s32.totalorder %s65, %s66
      %p75 = scmp.eq.s32.totalorder %s20, 0
      %p76 = por %p74, %p75
      %p77 = scmp.ne.s32.totalorder %s65, %s66
      %p78 = scmp.eq.s32.totalorder %s21, 1
      %p79 = por %p77, %p78
      %p81 = scmp.ne.s32.totalorder %s66, %s80
      %p82 = scmp.eq.s32.totalorder %s21, 0
      %p83 = por %p81, %p82
      %s84 = ssub.s32 %s22, %s34
      %s85 = ssub.s32 %s23, %s30
      %s86 = sor.u32 %s84, %s85
      %p87 = scmp.eq.s32.totalorder %s86, 0
      %s89 = sadd.s32 %s88, 1
      %s90 = scalar_select %p87, %s88, %s89
      %p93 = pneg %p87
      %p94 = scmp.eq.s32.totalorder %s15, 1
      %p95 = por %p93, %p94
      %p96 = scmp.ne.s32.totalorder %s88, %s91
      %p97 = scmp.eq.s32.totalorder %s15, 0
      %p98 = por %p96, %p97
      %p99 = scmp.ne.s32.totalorder %s88, %s91
      %p100 = scmp.eq.s32.totalorder %s20, 1
      %p101 = por %p99, %p100
      %p102 = scmp.ne.s32.totalorder %s91, %s92
      %p103 = scmp.eq.s32.totalorder %s20, 0
      %p104 = por %p102, %p103
      %p105 = scmp.ne.s32.totalorder %s91, %s92
      %p106 = scmp.eq.s32.totalorder %s21, 1
      %p107 = por %p105, %p106
      %p109 = scmp.ne.s32.totalorder %s92, %s108
      %p110 = scmp.eq.s32.totalorder %s21, 0
      %p111 = por %p109, %p110
      %p112 = scmp.le.s32.totalorder 1, %s15
      %p113 = scmp.lt.s32.totalorder %s15, 3
      %p114 = pnand %p112, %p113
      %p115 = pneg %p114
      // Predicated region
      $region9: #{tpu_custom_call.1} parent=5 // pred_check
        _
      $region10: #{tpu_custom_call.1} parent=5 // pred_check_branch
        %117 = sbr.rel (%p114) target = $region12
      $region11: #{tpu_custom_call.1} parent=5 // pred_region
        %s118 = ssub.s32 %s15, 1
        // Predicated region
        $region13: #{tpu_custom_call.1} parent=11 // pred_check
          %p119 = pneg %p76
        $region14: #{tpu_custom_call.1} parent=11 // pred_check_branch
          %121 = sbr.rel (%p119) target = $region16
        $region15: #{tpu_custom_call.1} parent=11 // pred_region
          %s123 = ssub.s32 16, 16
          %124 = vsyncadd [#allocation5], %s123
          %s126 = sshll.u32 %s1, 4
          %s127 = int_to_ptr.vmem [resolvable:$true] %s126
          %129 = dma.vmem_to_smem %s127, 16, [#allocation6], [#allocation5]
        $region16: #{tpu_custom_call.1} parent=11 // pred_fallthru
          _
      $region12: #{tpu_custom_call.1} parent=5 // pred_fallthru
        _
      %p130 = scmp.lt.s32.totalorder %s15, 2
      // Predicated region
      $region17: #{tpu_custom_call.1} parent=5 // pred_check
        %p131 = pneg %p130
      $region18: #{tpu_custom_call.1} parent=5 // pred_check_branch
        %133 = sbr.rel (%p131) target = $region20
      $region19: #{tpu_custom_call.1} parent=5 // pred_region
        // Predicated region
        $region21: #{tpu_custom_call.1} parent=19 // pred_check
          %p134 = pneg %p49
        $region22: #{tpu_custom_call.1} parent=19 // pred_check_branch
          %136 = sbr.rel (%p134) target = $region24
        $region23: #{tpu_custom_call.1} parent=19 // pred_region
          %s137 = sand.u32 %s39, 1
          %s138 = scalar_lea.sflag [#allocation3], %s137
          %s139 = sand.u32 %s39, 1
          %s140 = smul.addr %s139, 48
          %s141 = scalar_lea.vmem [#allocation2], %s140
          %s142 = smul.u32 2, %s23
          %s144 = ssub.s32 768, 768
          %145 = vsyncadd %s138, %s144
          %s146 = smul.addr %s22, 6
          %s147 = sadd.s32 %s142, %s146
          %s148 = smul.addr %s147, 128
          %s149 = scalar_lea.hbm %s0, %s148
          %s150 = sshll.u32 %s141, 4
          %s151 = int_to_ptr.vmem [resolvable:$true] %s150
          %156 = dma.hbm_to_vmem [thread:$0]  %s149, 768, %s151, %s138, 256, 256, 16
        $region24: #{tpu_custom_call.1} parent=19 // pred_fallthru
          _
      $region20: #{tpu_custom_call.1} parent=5 // pred_fallthru
        _
      %p157 = scmp.le.s32.totalorder 1, %s15
      %p158 = scmp.lt.s32.totalorder %s15, 3
      %p159 = pnand %p157, %p158
      %p160 = pneg %p159
      // Predicated region
      $region25: #{tpu_custom_call.1} parent=5 // pred_check
        _
      $region26: #{tpu_custom_call.1} parent=5 // pred_check_branch
        %162 = sbr.rel (%p159) target = $region28
      $region27: #{tpu_custom_call.1} parent=5 // pred_region
        %s163 = ssub.s32 %s15, 1
        %s164 = sand.u32 %s42, 1
        %s165 = scalar_lea.sflag [#allocation3], %s164
        %s166 = sand.u32 %s42, 1
        %s167 = smul.addr %s166, 48
        %s168 = scalar_lea.vmem [#allocation2], %s167
        // Predicated region
        $region29: #{tpu_custom_call.1} parent=27 // pred_check
          %p169 = pneg %p55
        $region30: #{tpu_custom_call.1} parent=27 // pred_check_branch
          %171 = sbr.rel (%p169) target = $region32
        $region31: #{tpu_custom_call.1} parent=27 // pred_region
          %172 = dma.done %s165, 768
        $region32: #{tpu_custom_call.1} parent=27 // pred_fallthru
          _
        // Predicated region
        $region33: #{tpu_custom_call.1} parent=27 // pred_check
          %p173 = pneg %p76
        $region34: #{tpu_custom_call.1} parent=27 // pred_check_branch
          %175 = sbr.rel (%p173) target = $region36
        $region35: #{tpu_custom_call.1} parent=27 // pred_region
          %176 = dma.done [#allocation5], 16
        $region36: #{tpu_custom_call.1} parent=27 // pred_fallthru
          _
        %177 = sfence
        %s178 = sand.u32 %s42, 1
        %s179 = scalar_lea.sflag [#allocation3], %s178
        %s180 = sand.u32 %s42, 1
        %s181 = smul.addr %s180, 48
        %s182 = scalar_lea.vmem [#allocation2], %s181
        %p183 = pneg %p55
        %p184 = pneg %p52
        %p185 = pneg %p76
        %p186 = pneg %p73
        %p187 = pneg %p104
        %p188 = pneg %p101
        %s189 = sand.u32 %s91, 1
        %s190 = scalar_lea.sflag [#allocation4], %s189
        %s191 = sand.u32 %s91, 1
        %s192 = smul.addr %s191, 48
        %s193 = scalar_lea.vmem [#allocation7], %s192
        %s194 = smul.u32 2, %s25
        %s195 = smul.u32 2, %s25
        %s196 = sld [smem:[#allocation6]]
        %s197 = sld [smem:[#allocation6 + $0x1]]
        %s198 = smul.u32 %s25, 256
        %v199 = vlaneseq
        %v200 = vand.u32 %v199, 127
        %v201 = vadd.s32 %v200, 128
        %v202 = vstv %s198
        %v203 = vadd.s32 %v200, %v202
        %v204 = vadd.s32 %v201, %v202
        %v205 = vcvt.s32.f32 %v203
        %v206 = vcvt.s32.f32 %v204
        %v207 = vrcp.pop 16.0
        %v208 = vmul.f32 %v205, %v207
        %v209 = vmul.f32 %v206, %v207
        %v210 = vfloor.f32 %v208
        %v211 = vfloor.f32 %v209
        %v212 = vmul.f32 %v210, 16.0
        %v213 = vmul.f32 %v211, 16.0
        %v214 = vsub.f32 %v205, %v212
        %v215 = vsub.f32 %v206, %v213
        %v216 = vld [vmem:[%s168] sm:$0xff]
        %v217 = vld [vmem:[%s168 + $0x8] sm:$0xff]
        %v218 = vmul.f32 %v216, 0.5
        %v219 = vmul.f32 %v217, 0.5
        %v220 = vtanh.pop %v218
        %v221 = vtanh.pop %v219
        %v222 = vmul.f32 %v220, 0.5
        %v223 = vmul.f32 %v221, 0.5
        %v224 = vadd.f32 %v222, 0.5
        %v225 = vadd.f32 %v223, 0.5
        %v226 = vmul.f32 %v216, 1.442695
        %v227 = vpow.pop %v226
        %v228 = vmul.f32 %v217, 1.442695
        %v229 = vpow.pop %v228
        %v230 = vmul.f32 %v227, 8.0
        %v231 = vmul.f32 %v229, 8.0
        %v232 = vadd.f32 %v224, %v214
        %v233 = vadd.f32 %v225, %v215
        %v234 = vstv %s196
        %v235 = vmul.f32 %v232, %v234
        %v236 = vmul.f32 %v233, %v234
        %v237 = vadd.f32 %v224, %v210
        %v238 = vadd.f32 %v225, %v211
        %v239 = vstv %s197
        %v240 = vmul.f32 %v237, %v239
        %v241 = vmul.f32 %v238, %v239
        %v244 = vrot.slane %v230, 2
        %v245 = vrot.slane %v231, 2
        %v248 = vsub.f32 %v235, %v244
        %v249 = vsub.f32 %v236, %v245
        %v252 = vcombine.low %v248, %v249
        %v254 = vunpack.c.l.s4 1966171168
        %v255 = vunpack.c.0.s8 %v254
        %v256 = vlaneseq
        %v257 = vshrl.u32 %v256, 7
        %v258 = vsub.s32 %v255, %v257
        %v259 = vrot.slane %v252, %v258
        %v261 = vunpack.c.l.s4 1966171168
        %v262 = vunpack.c.0.s8 %v261
        %v263 = vlaneseq
        %v264 = vshrl.u32 %v263, 7
        %v265 = vsub.s32 %v262, %v264
        %v266 = vrot.slane %v259, %v265
        %v268 = vlaneseq
        %vm269 = vcmp.ge.s32.totalorder %v268, 0
        %vm270 = vcmp.lt.s32.totalorder %v268, 256
        %vm271 = vmand %vm269, %vm270
        %272 = vst.msk [vmem:[%s193] ss:$8 sm:$0x3] %vm271, %v266
        %273 = vst.msk [vmem:[%s193] ss:$8 sm:$0x0] %vm271, %v266
        %v274 = vsub.f32 %v240, %v244
        %v275 = vsub.f32 %v241, %v245
        %v278 = vcombine.low %v274, %v275
        %v280 = vunpack.c.l.s4 1966171168
        %v281 = vunpack.c.0.s8 %v280
        %v282 = vlaneseq
        %v283 = vshrl.u32 %v282, 7
        %v284 = vsub.s32 %v281, %v283
        %v285 = vrot.slane %v278, %v284
        %v286 = vcombine.high %v285, %v285
        %v288 = vunpack.c.l.s4 1966171168
        %v289 = vunpack.c.0.s8 %v288
        %v290 = vlaneseq
        %v291 = vshrl.u32 %v290, 7
        %v292 = vsub.s32 %v289, %v291
        %v293 = vrot.slane %v286, %v292
        %s295 = scalar_lea.vmem %s193, 1 [#allocation7]
        %296 = vst.msk [vmem:[%s295] ss:$8 sm:$0x3] %vm271, %v293
        %297 = vst.msk [vmem:[%s295] ss:$8 sm:$0x0] %vm271, %v293
        %v298 = vadd.f32 %v235, %v244
        %v299 = vadd.f32 %v236, %v245
        %v302 = vcombine.low %v298, %v299
        %v304 = vunpack.c.l.s4 1966171168
        %v305 = vunpack.c.0.s8 %v304
        %v306 = vlaneseq
        %v307 = vshrl.u32 %v306, 7
        %v308 = vsub.s32 %v305, %v307
        %v309 = vrot.slane %v302, %v308
        %v311 = vunpack.c.l.s4 1966171168
        %v312 = vunpack.c.0.s8 %v311
        %v313 = vlaneseq
        %v314 = vshrl.u32 %v313, 7
        %v315 = vsub.s32 %v312, %v314
        %v316 = vrot.slane %v309, %v315
        %s318 = scalar_lea.vmem %s193, 2 [#allocation7]
        %319 = vst.msk [vmem:[%s318] ss:$8 sm:$0x3] %vm271, %v316
        %320 = vst.msk [vmem:[%s318] ss:$8 sm:$0x0] %vm271, %v316
        %v321 = vadd.f32 %v240, %v244
        %v322 = vadd.f32 %v241, %v245
        %v325 = vcombine.low %v321, %v322
        %v327 = vunpack.c.l.s4 1966171168
        %v328 = vunpack.c.0.s8 %v327
        %v329 = vlaneseq
        %v330 = vshrl.u32 %v329, 7
        %v331 = vsub.s32 %v328, %v330
        %v332 = vrot.slane %v325, %v331
        %v333 = vcombine.high %v332, %v332
        %v335 = vunpack.c.l.s4 1966171168
        %v336 = vunpack.c.0.s8 %v335
        %v337 = vlaneseq
        %v338 = vshrl.u32 %v337, 7
        %v339 = vsub.s32 %v336, %v338
        %v340 = vrot.slane %v333, %v339
        %s342 = scalar_lea.vmem %s193, 3 [#allocation7]
        %343 = vst.msk [vmem:[%s342] ss:$8 sm:$0x3] %vm271, %v340
        %344 = vst.msk [vmem:[%s342] ss:$8 sm:$0x0] %vm271, %v340
        %345 = vst [vmem:[%s193] sm:$0xf0] %v224
        %346 = vst [vmem:[%s193 + $0x8] sm:$0xf0] %v225
        %v347 = vld [vmem:[%s168 + $0x10] sm:$0xff]
        %v348 = vld [vmem:[%s168 + $0x18] sm:$0xff]
        %v349 = vmul.f32 %v347, 0.5
        %v350 = vmul.f32 %v348, 0.5
        %v351 = vtanh.pop %v349
        %v352 = vtanh.pop %v350
        %v353 = vmul.f32 %v351, 0.5
        %v354 = vmul.f32 %v352, 0.5
        %v355 = vadd.f32 %v353, 0.5
        %v356 = vadd.f32 %v354, 0.5
        %v357 = vmul.f32 %v347, 1.442695
        %v358 = vpow.pop %v357
        %v359 = vmul.f32 %v348, 1.442695
        %v360 = vpow.pop %v359
        %v361 = vmul.f32 %v358, 16.0
        %v362 = vmul.f32 %v360, 16.0
        %v363 = vadd.f32 %v355, %v214
        %v364 = vadd.f32 %v356, %v215
        %v365 = vmul.f32 %v363, %v234
        %v366 = vmul.f32 %v364, %v234
        %v367 = vadd.f32 %v355, %v210
        %v368 = vadd.f32 %v356, %v211
        %v369 = vmul.f32 %v367, %v239
        %v370 = vmul.f32 %v368, %v239
        %v373 = vrot.slane %v361, 2
        %v374 = vrot.slane %v362, 2
        %v377 = vsub.f32 %v365, %v373
        %v378 = vsub.f32 %v366, %v374
        %v381 = vcombine.low %v377, %v378
        %v383 = vunpack.c.l.s4 1966171168
        %v384 = vunpack.c.0.s8 %v383
        %v385 = vlaneseq
        %v386 = vshrl.u32 %v385, 7
        %v387 = vsub.s32 %v384, %v386
        %v388 = vrot.slane %v381, %v387
        %v390 = vunpack.c.l.s4 1966171168
        %v391 = vunpack.c.0.s8 %v390
        %v392 = vlaneseq
        %v393 = vshrl.u32 %v392, 7
        %v394 = vsub.s32 %v391, %v393
        %v395 = vrot.slane %v388, %v394
        %s397 = scalar_lea.vmem %s193, 16 [#allocation7]
        %398 = vst.msk [vmem:[%s397] ss:$8 sm:$0x3] %vm271, %v395
        %399 = vst.msk [vmem:[%s397] ss:$8 sm:$0x0] %vm271, %v395
        %v400 = vsub.f32 %v369, %v373
        %v401 = vsub.f32 %v370, %v374
        %v404 = vcombine.low %v400, %v401
        %v406 = vunpack.c.l.s4 1966171168
        %v407 = vunpack.c.0.s8 %v406
        %v408 = vlaneseq
        %v409 = vshrl.u32 %v408, 7
        %v410 = vsub.s32 %v407, %v409
        %v411 = vrot.slane %v404, %v410
        %v412 = vcombine.high %v411, %v411
        %v414 = vunpack.c.l.s4 1966171168
        %v415 = vunpack.c.0.s8 %v414
        %v416 = vlaneseq
        %v417 = vshrl.u32 %v416, 7
        %v418 = vsub.s32 %v415, %v417
        %v419 = vrot.slane %v412, %v418
        %s421 = scalar_lea.vmem %s397, 1 [#allocation7]
        %422 = vst.msk [vmem:[%s421] ss:$8 sm:$0x3] %vm271, %v419
        %423 = vst.msk [vmem:[%s421] ss:$8 sm:$0x0] %vm271, %v419
        %v424 = vadd.f32 %v365, %v373
        %v425 = vadd.f32 %v366, %v374
        %v428 = vcombine.low %v424, %v425
        %v430 = vunpack.c.l.s4 1966171168
        %v431 = vunpack.c.0.s8 %v430
        %v432 = vlaneseq
        %v433 = vshrl.u32 %v432, 7
        %v434 = vsub.s32 %v431, %v433
        %v435 = vrot.slane %v428, %v434
        %v437 = vunpack.c.l.s4 1966171168
        %v438 = vunpack.c.0.s8 %v437
        %v439 = vlaneseq
        %v440 = vshrl.u32 %v439, 7
        %v441 = vsub.s32 %v438, %v440
        %v442 = vrot.slane %v435, %v441
        %s444 = scalar_lea.vmem %s397, 2 [#allocation7]
        %445 = vst.msk [vmem:[%s444] ss:$8 sm:$0x3] %vm271, %v442
        %446 = vst.msk [vmem:[%s444] ss:$8 sm:$0x0] %vm271, %v442
        %v447 = vadd.f32 %v369, %v373
        %v448 = vadd.f32 %v370, %v374
        %v451 = vcombine.low %v447, %v448
        %v453 = vunpack.c.l.s4 1966171168
        %v454 = vunpack.c.0.s8 %v453
        %v455 = vlaneseq
        %v456 = vshrl.u32 %v455, 7
        %v457 = vsub.s32 %v454, %v456
        %v458 = vrot.slane %v451, %v457
        %v459 = vcombine.high %v458, %v458
        %v461 = vunpack.c.l.s4 1966171168
        %v462 = vunpack.c.0.s8 %v461
        %v463 = vlaneseq
        %v464 = vshrl.u32 %v463, 7
        %v465 = vsub.s32 %v462, %v464
        %v466 = vrot.slane %v459, %v465
        %s468 = scalar_lea.vmem %s397, 3 [#allocation7]
        %469 = vst.msk [vmem:[%s468] ss:$8 sm:$0x3] %vm271, %v466
        %470 = vst.msk [vmem:[%s468] ss:$8 sm:$0x0] %vm271, %v466
        %471 = vst [vmem:[%s397] sm:$0xf0] %v355
        %472 = vst [vmem:[%s397 + $0x8] sm:$0xf0] %v356
        %v473 = vld [vmem:[%s168 + $0x20] sm:$0xff]
        %v474 = vld [vmem:[%s168 + $0x28] sm:$0xff]
        %v475 = vmul.f32 %v473, 0.5
        %v476 = vmul.f32 %v474, 0.5
        %v477 = vtanh.pop %v475
        %v478 = vtanh.pop %v476
        %v479 = vmul.f32 %v477, 0.5
        %v480 = vmul.f32 %v478, 0.5
        %v481 = vadd.f32 %v479, 0.5
        %v482 = vadd.f32 %v480, 0.5
        %v483 = vmul.f32 %v473, 1.442695
        %v484 = vpow.pop %v483
        %v485 = vmul.f32 %v474, 1.442695
        %v486 = vpow.pop %v485
        %v487 = vmul.f32 %v484, 32.0
        %v488 = vmul.f32 %v486, 32.0
        %v489 = vmul.f32 %v484, 24.0
        %v490 = vmul.f32 %v486, 24.0
        %v491 = vadd.f32 %v481, %v214
        %v492 = vadd.f32 %v482, %v215
        %v493 = vmul.f32 %v491, %v234
        %v494 = vmul.f32 %v492, %v234
        %v495 = vadd.f32 %v481, %v210
        %v496 = vadd.f32 %v482, %v211
        %v497 = vmul.f32 %v495, %v239
        %v498 = vmul.f32 %v496, %v239
        %v501 = vrot.slane %v487, 2
        %v502 = vrot.slane %v488, 2
        %v505 = vsub.f32 %v493, %v501
        %v506 = vsub.f32 %v494, %v502
        %v509 = vcombine.low %v505, %v506
        %v511 = vunpack.c.l.s4 1966171168
        %v512 = vunpack.c.0.s8 %v511
        %v513 = vlaneseq
        %v514 = vshrl.u32 %v513, 7
        %v515 = vsub.s32 %v512, %v514
        %v516 = vrot.slane %v509, %v515
        %v518 = vunpack.c.l.s4 1966171168
        %v519 = vunpack.c.0.s8 %v518
        %v520 = vlaneseq
        %v521 = vshrl.u32 %v520, 7
        %v522 = vsub.s32 %v519, %v521
        %v523 = vrot.slane %v516, %v522
        %s525 = scalar_lea.vmem %s193, 32 [#allocation7]
        %526 = vst.msk [vmem:[%s525] ss:$8 sm:$0x3] %vm271, %v523
        %527 = vst.msk [vmem:[%s525] ss:$8 sm:$0x0] %vm271, %v523
        %v530 = vrot.slane %v489, 2
        %v531 = vrot.slane %v490, 2
        %v534 = vsub.f32 %v497, %v530
        %v535 = vsub.f32 %v498, %v531
        %v538 = vcombine.low %v534, %v535
        %v540 = vunpack.c.l.s4 1966171168
        %v541 = vunpack.c.0.s8 %v540
        %v542 = vlaneseq
        %v543 = vshrl.u32 %v542, 7
        %v544 = vsub.s32 %v541, %v543
        %v545 = vrot.slane %v538, %v544
        %v546 = vcombine.high %v545, %v545
        %v548 = vunpack.c.l.s4 1966171168
        %v549 = vunpack.c.0.s8 %v548
        %v550 = vlaneseq
        %v551 = vshrl.u32 %v550, 7
        %v552 = vsub.s32 %v549, %v551
        %v553 = vrot.slane %v546, %v552
        %s555 = scalar_lea.vmem %s525, 1 [#allocation7]
        %556 = vst.msk [vmem:[%s555] ss:$8 sm:$0x3] %vm271, %v553
        %557 = vst.msk [vmem:[%s555] ss:$8 sm:$0x0] %vm271, %v553
        %v558 = vadd.f32 %v493, %v501
        %v559 = vadd.f32 %v494, %v502
        %v562 = vcombine.low %v558, %v559
        %v564 = vunpack.c.l.s4 1966171168
        %v565 = vunpack.c.0.s8 %v564
        %v566 = vlaneseq
        %v567 = vshrl.u32 %v566, 7
        %v568 = vsub.s32 %v565, %v567
        %v569 = vrot.slane %v562, %v568
        %v571 = vunpack.c.l.s4 1966171168
        %v572 = vunpack.c.0.s8 %v571
        %v573 = vlaneseq
        %v574 = vshrl.u32 %v573, 7
        %v575 = vsub.s32 %v572, %v574
        %v576 = vrot.slane %v569, %v575
        %s578 = scalar_lea.vmem %s525, 2 [#allocation7]
        %579 = vst.msk [vmem:[%s578] ss:$8 sm:$0x3] %vm271, %v576
        %580 = vst.msk [vmem:[%s578] ss:$8 sm:$0x0] %vm271, %v576
        %v581 = vadd.f32 %v497, %v530
        %v582 = vadd.f32 %v498, %v531
        %v585 = vcombine.low %v581, %v582
        %v587 = vunpack.c.l.s4 1966171168
        %v588 = vunpack.c.0.s8 %v587
        %v589 = vlaneseq
        %v590 = vshrl.u32 %v589, 7
        %v591 = vsub.s32 %v588, %v590
        %v592 = vrot.slane %v585, %v591
        %v593 = vcombine.high %v592, %v592
        %v595 = vunpack.c.l.s4 1966171168
        %v596 = vunpack.c.0.s8 %v595
        %v597 = vlaneseq
        %v598 = vshrl.u32 %v597, 7
        %v599 = vsub.s32 %v596, %v598
        %v600 = vrot.slane %v593, %v599
        %s602 = scalar_lea.vmem %s525, 3 [#allocation7]
        %603 = vst.msk [vmem:[%s602] ss:$8 sm:$0x3] %vm271, %v600
        %604 = vst.msk [vmem:[%s602] ss:$8 sm:$0x0] %vm271, %v600
        %605 = vst [vmem:[%s525] sm:$0xf0] %v481
        %606 = vst [vmem:[%s525 + $0x8] sm:$0xf0] %v482
        %s607 = sand.u32 %s91, 1
        %s608 = scalar_lea.sflag [#allocation4], %s607
        %s609 = sand.u32 %s91, 1
        %s610 = smul.addr %s609, 48
        %s611 = scalar_lea.vmem [#allocation7], %s610
        // Predicated region
        $region37: #{tpu_custom_call.1} parent=27 // pred_check
          %p612 = pneg %p101
        $region38: #{tpu_custom_call.1} parent=27 // pred_check_branch
          %614 = sbr.rel (%p612) target = $region40
        $region39: #{tpu_custom_call.1} parent=27 // pred_region
          %s615 = smul.u32 2, %s25
          %s617 = ssub.s32 768, 768
          %618 = vsyncadd %s608, %s617
          %s619 = smul.addr %s24, 6
          %s620 = sadd.s32 %s615, %s619
          %s621 = smul.addr %s620, 128
          %s622 = scalar_lea.hbm %s2, %s621
          %s623 = sshll.u32 %s611, 4
          %s624 = int_to_ptr.vmem [resolvable:$true] %s623
          %629 = dma.vmem_to_hbm [thread:$0]  %s624, 768, %s622, %s608, 256, 256, 16
        $region40: #{tpu_custom_call.1} parent=27 // pred_fallthru
          _
      $region28: #{tpu_custom_call.1} parent=5 // pred_fallthru
        _
      %p630 = scmp.le.s32.totalorder 2, %s15
      // Predicated region
      $region41: #{tpu_custom_call.1} parent=5 // pred_check
        %p631 = pneg %p630
      $region42: #{tpu_custom_call.1} parent=5 // pred_check_branch
        %633 = sbr.rel (%p631) target = $region44
      $region43: #{tpu_custom_call.1} parent=5 // pred_region
        %s634 = ssub.s32 %s15, 2
        // Predicated region
        $region45: #{tpu_custom_call.1} parent=43 // pred_check
          %p635 = pneg %p107
        $region46: #{tpu_custom_call.1} parent=43 // pred_check_branch
          %637 = sbr.rel (%p635) target = $region48
        $region47: #{tpu_custom_call.1} parent=43 // pred_region
          %s638 = sand.u32 %s92, 1
          %s639 = scalar_lea.sflag [#allocation4], %s638
          %s640 = sand.u32 %s92, 1
          %s641 = smul.addr %s640, 48
          %s642 = scalar_lea.vmem [#allocation7], %s641
          %643 = dma.done %s639, 768
        $region48: #{tpu_custom_call.1} parent=43 // pred_fallthru
          _
      $region44: #{tpu_custom_call.1} parent=5 // pred_fallthru
        _
    $region6: #{tpu_custom_call.1} parent=1 // loop_footer
      %s19 = sadd.s32 1, %s15
    $region7: #{tpu_custom_call.1} parent=1 // loop_footer_branch
      %14 = sbr.rel target = $region3
    $region8: #{tpu_custom_call.1} parent=1 // loop_exit
      _
    %644 = vsyncpa [#allocation3], 1
    %s645 = scalar_lea.sflag [#allocation3], 1
    %646 = vsyncpa %s645, 1
    %647 = vsyncpa [#allocation4], 1
    %s648 = scalar_lea.sflag [#allocation4], 1
    %649 = vsyncpa %s648, 1
    %650 = vsyncpa [#allocation5], 1
    %s651 = scalar_lea.sflag [#allocation5], 1
    %652 = vsyncpa %s651, 1

</llo_original>
